<compile_context>
chip_gen: v5e
topology: v5e:2x2
jax: 0.10.0
libtpu: 0.0.40
codegen_flags: <defaults>
</compile_context>

<pallas_src>
import jax
import jax.numpy as jnp
from jax.experimental import pallas as pl
from jax.experimental.pallas import tpu as pltpu

# ----------------------------- model dimensions -----------------------------
B = 2            # example batch (the kernel itself handles any batch via tiling/padding)
C = 4            # input_channels
L = 16           # input_dim (1-D)
D_IN = C * L     # flatten_dim = 64
H_ENC = 32       # dense_hidden_dims[-1]
LATENT = 8       # latent_dim
H_DEC = 32       # reversed dense_hidden_dims[0]
D_OUT = C * L    # decoder flatten_dim = 64
NOISE_OUT_LOGVAR = -3.0

# Batch-tile size: <=256 rows per grid step (multiple of 8 sublanes; 256 fills the
# v6e/v7x MXU and is a multiple of 128 for v5e).
MAX_BLOCK_BATCH = 256

# ------------------------ packed-parameter slab layout -----------------------
# One (P_ROWS, P_COLS) f32 slab holds every weight and bias, lane-padded to 128
# and with each section starting on an 8-row (sublane) boundary.
P_COLS = 128
R_WE1 = 0                      # (D_IN,  H_ENC)    rows [0, 64)
R_WHEAD = R_WE1 + D_IN         # (H_ENC, 2*LATENT) rows [64, 96)   (wmu | wlv fused)
R_WD1 = R_WHEAD + H_ENC        # (LATENT, H_DEC)   rows [96, 104)
R_WD2 = R_WD1 + LATENT         # (H_DEC, D_OUT)    rows [104, 136)
R_BE1 = R_WD2 + H_DEC          # bias rows, each on its own 8-aligned row
R_BHEAD = R_BE1 + 8
R_BD1 = R_BHEAD + 8
R_BD2 = R_BD1 + 8
P_ROWS = R_BD2 + 8             # 168  (multiple of 8)

# ------------------------------ packed input ---------------------------------
# One lane-dense (B_pad, 128) input: [x_flat | eps | zero-pad].
I_X = 0
I_EPS = I_X + D_IN             # 64
IN_PACK = 128

# ------------------------------ packed output --------------------------------
# One lane-dense (B_pad, 128) output: [mu | sigma | z | loc | zero-pad].
O_MU = 0
O_SIGMA = O_MU + LATENT
O_Z = O_SIGMA + LATENT
O_LOC = O_Z + LATENT
O_USED = O_LOC + D_OUT         # 88
OUT_PACK = 128


def _round_up(n, m):
    return -(-n // m) * m


# ------------------------------- Pallas kernel ------------------------------
def vae_kernel(xin_ref, p_ref, out_ref):
    """Fused VAE forward for one batch tile: encoder MLP -> fused (mu,logvar) head
    -> reparameterize -> decoder MLP.  Two inputs, one lane-dense packed output."""
    xin = xin_ref[...]                                       # (TB, 128)
    x = xin[:, I_X:I_X + D_IN]                               # (TB, 64)
    eps = xin[:, I_EPS:I_EPS + LATENT]                       # (TB, 8)

    # ---- unpack parameter slab (static slices of the VMEM-resident block) ----
    we1 = p_ref[R_WE1:R_WE1 + D_IN, 0:H_ENC]                 # (64, 32)
    whd = p_ref[R_WHEAD:R_WHEAD + H_ENC, 0:2 * LATENT]       # (32, 16) = [wmu | wlv]
    wd1 = p_ref[R_WD1:R_WD1 + LATENT, 0:H_DEC]               # (8, 32)
    wd2 = p_ref[R_WD2:R_WD2 + H_DEC, 0:D_OUT]                # (32, 64)
    be1 = p_ref[R_BE1:R_BE1 + 1, 0:H_ENC]                    # (1, 32)
    bhd = p_ref[R_BHEAD:R_BHEAD + 1, 0:2 * LATENT]           # (1, 16)
    bd1 = p_ref[R_BD1:R_BD1 + 1, 0:H_DEC]                    # (1, 32)
    bd2 = p_ref[R_BD2:R_BD2 + 1, 0:D_OUT]                    # (1, 64)

    # ---- Encoder ----
    h = jnp.dot(x, we1, preferred_element_type=jnp.float32) + be1
    h = jnp.maximum(h, 0.0)                                  # ReLU (act_func default)

    # Fused mu/logvar head: one matmul, then static split.
    head = jnp.dot(h, whd, preferred_element_type=jnp.float32) + bhd
    mu = head[:, 0:LATENT]
    logvar = head[:, LATENT:2 * LATENT]
    sigma = jnp.exp(0.5 * logvar)                            # Normal scale = logvar.exp().pow(0.5)

    # ---- Reparameterization trick (training mode: q.rsample()) ----
    z = mu + sigma * eps

    # ---- Decoder ----
    hd = jnp.dot(z, wd1, preferred_element_type=jnp.float32) + bd1
    hd = jnp.maximum(hd, 0.0)                                # ReLU
    loc = jnp.dot(hd, wd2, preferred_element_type=jnp.float32) + bd2
    # final_activation=False and conv_flts=None -> no activation on the last layer.

    # ---- single full-width (unmasked) 128-lane store ----
    tb = xin.shape[0]
    pad = jnp.zeros((tb, OUT_PACK - O_USED), jnp.float32)
    out_ref[...] = jnp.concatenate([mu, sigma, z, loc, pad], axis=1)


@jax.jit
def vae_forward(x, eps, param_slab, dec_scale):
    """Runs the fused, batch-tiled VAE kernel.

    Returns (dec_loc, dec_scale, q_mu, q_sigma, z), matching the PyTorch forward's
    p.loc, p.scale, q.loc, q.scale, z.
    """
    bx = x.shape[0]
    x_flat = x.reshape(bx, -1)                               # torch.flatten(x, start_dim=1)

    # Static tile sizing (shapes are static under jit).
    tb = min(MAX_BLOCK_BATCH, _round_up(bx, 8))
    b_pad = _round_up(bx, tb)
    n_blocks = b_pad // tb

    # Pack [x_flat | eps | pad] into a single lane-dense input slab (one input DMA stream).
    xin = jnp.zeros((b_pad, IN_PACK), jnp.float32)
    xin = xin.at[:bx, I_X:I_X + D_IN].set(x_flat)
    xin = xin.at[:bx, I_EPS:I_EPS + LATENT].set(eps)

    flops = 2 * b_pad * (D_IN * H_ENC + H_ENC * 2 * LATENT + LATENT * H_DEC + H_DEC * D_OUT)
    bytes_accessed = 4 * (P_ROWS * P_COLS + b_pad * (IN_PACK + OUT_PACK))
    cost = pl.CostEstimate(flops=flops,
                           transcendentals=b_pad * LATENT,
                           bytes_accessed=bytes_accessed)

    packed = pl.pallas_call(
        vae_kernel,
        out_shape=jax.ShapeDtypeStruct((b_pad, OUT_PACK), jnp.float32),
        grid=(n_blocks,),
        in_specs=[
            # Batch-tiled activations.
            pl.BlockSpec((tb, IN_PACK), lambda i: (i, 0),
                         memory_space=pltpu.MemorySpace.VMEM),
            # Weight slab: same block for every grid step -> DMA'd once, VMEM-resident.
            pl.BlockSpec((P_ROWS, P_COLS), lambda i: (0, 0),
                         memory_space=pltpu.MemorySpace.VMEM),
        ],
        out_specs=pl.BlockSpec((tb, OUT_PACK), lambda i: (i, 0),
                               memory_space=pltpu.MemorySpace.VMEM),
        compiler_params=pltpu.CompilerParams(dimension_semantics=("parallel",)),
        cost_estimate=cost,
    )(xin, param_slab)

    mu = packed[:bx, O_MU:O_MU + LATENT]
    sigma = packed[:bx, O_SIGMA:O_SIGMA + LATENT]
    z = packed[:bx, O_Z:O_Z + LATENT]
    dec_loc = packed[:bx, O_LOC:O_LOC + D_OUT].reshape(bx, C, L)
    # dec_scale is the precomputed constant exp(0.5 * w_out_logvar) (noise_fixed=True).
    return dec_loc, dec_scale, mu, sigma, z


# --------------------------- deterministic params ----------------------------
def init_linear(key, fan_in, fan_out):
    """PyTorch-default-style uniform init, deterministic. Returns W as (in, out)."""
    kw, kb = jax.random.split(key)
    bound = 1.0 / jnp.sqrt(jnp.float32(fan_in))
    w = jax.random.uniform(kw, (fan_in, fan_out), jnp.float32, -bound, bound)
    b = jax.random.uniform(kb, (1, fan_out), jnp.float32, -bound, bound)
    return w, b


def make_params(key):
    """Build raw per-layer params (for the reference) and the packed kernel slab (once)."""
    keys = jax.random.split(key, 5)
    we1, be1 = init_linear(keys[0], D_IN, H_ENC)        # encoder w_dense[0]
    wmu, bmu = init_linear(keys[1], H_ENC, LATENT)      # encoder w_mu
    wlv, blv = init_linear(keys[2], H_ENC, LATENT)      # encoder w_logvar
    wd1, bd1 = init_linear(keys[3], LATENT, H_DEC)      # decoder w_dense[0]
    wd2, bd2 = init_linear(keys[4], H_DEC, D_OUT)       # decoder w_dense[1]
    w_out_logvar = jnp.full((1, C, L), NOISE_OUT_LOGVAR, jnp.float32)

    raw = dict(we1=we1, be1=be1, wmu=wmu, bmu=bmu, wlv=wlv, blv=blv,
               wd1=wd1, bd1=bd1, wd2=wd2, bd2=bd2, w_out_logvar=w_out_logvar)

    # Fused encoder head: [wmu | wlv] along the output dimension.
    w_head = jnp.concatenate([wmu, wlv], axis=1)        # (H_ENC, 2*LATENT)
    b_head = jnp.concatenate([bmu, blv], axis=1)        # (1, 2*LATENT)

    slab = jnp.zeros((P_ROWS, P_COLS), jnp.float32)
    slab = slab.at[R_WE1:R_WE1 + D_IN, :H_ENC].set(we1)
    slab = slab.at[R_WHEAD:R_WHEAD + H_ENC, :2 * LATENT].set(w_head)
    slab = slab.at[R_WD1:R_WD1 + LATENT, :H_DEC].set(wd1)
    slab = slab.at[R_WD2:R_WD2 + H_DEC, :D_OUT].set(wd2)
    slab = slab.at[R_BE1, :H_ENC].set(be1[0])
    slab = slab.at[R_BHEAD, :2 * LATENT].set(b_head[0])
    slab = slab.at[R_BD1, :H_DEC].set(bd1[0])
    slab = slab.at[R_BD2, :D_OUT].set(bd2[0])

    # Constant output scale (noise_fixed=True): computed once, not per forward call.
    dec_scale = jnp.exp(0.5 * w_out_logvar)             # (1, C, L)
    return raw, slab, dec_scale


# ------------------------------ reference (jnp) -------------------------------
def vae_reference(x, eps, p):
    bx = x.shape[0]
    xf = x.reshape(bx, -1)
    h = jnp.maximum(xf @ p["we1"] + p["be1"], 0.0)
    mu = h @ p["wmu"] + p["bmu"]
    logvar = h @ p["wlv"] + p["blv"]
    sigma = jnp.exp(0.5 * logvar)
    z = mu + sigma * eps
    hd = jnp.maximum(z @ p["wd1"] + p["bd1"], 0.0)
    loc = (hd @ p["wd2"] + p["bd2"]).reshape(bx, C, L)
    scale = jnp.exp(0.5 * p["w_out_logvar"])
    return loc, scale, mu, sigma, z


def _check(outs, refs):
    for o, r in zip(outs, refs):
        assert o.shape == r.shape and o.dtype == r.dtype
        assert jnp.allclose(o, r, atol=1e-5, rtol=1e-5), "mismatch vs reference"


if __name__ == "__main__":
    root = jax.random.PRNGKey(0)
    k_x, k_eps, k_p, k_x2, k_eps2 = jax.random.split(root, 5)

    raw_params, param_slab, dec_scale = make_params(k_p)

    # --- small-shape check (the module's nominal shapes: batch=2, channels=4, length=16) ---
    x = jax.random.normal(k_x, (B, C, L), jnp.float32)          # NCL input
    eps = jax.random.normal(k_eps, (B, LATENT), jnp.float32)    # rsample noise
    outs = jax.block_until_ready(vae_forward(x, eps, param_slab, dec_scale))
    _check(outs, vae_reference(x, eps, raw_params))

    # --- batch-tiled path check: B=512 -> TB=256, grid=(2,), weight slab stays resident ---
    BB = 512
    x2 = jax.random.normal(k_x2, (BB, C, L), jnp.float32)
    eps2 = jax.random.normal(k_eps2, (BB, LATENT), jnp.float32)
    outs2 = jax.block_until_ready(vae_forward(x2, eps2, param_slab, dec_scale))
    _check(outs2, vae_reference(x2, eps2, raw_params))

    print("KERNEL_OK")
</pallas_src>

<mosaic_0001>
module attributes {stable_mosaic.version = 11 : i64} {
  func.func @vae_kernel(%arg0: i32, %arg1: memref<8x128xf32, #tpu.memory_space<vmem>>, %arg2: memref<168x128xf32, #tpu.memory_space<vmem>>, %arg3: memref<8x128xf32, #tpu.memory_space<vmem>>) attributes {dimension_semantics = [#tpu.dimension_semantics<parallel>], iteration_bounds = array<i64: 1>, scalar_prefetch = 0 : i64, scratch_operands = 0 : i64, tpu.core_type = #tpu.core_type<tc>, window_params = [{transform_indices = @transform_0, window_bounds = array<i64: 8, 128>}, {pipeline_mode = #tpu.pipeline_mode<synchronous>, transform_indices = @transform_1, window_bounds = array<i64: 168, 128>}, {transform_indices = @transform_2, window_bounds = array<i64: 8, 128>}]} {
    %c0 = arith.constant 0 : index
    %c0_0 = arith.constant 0 : index
    %0 = vector.load %arg1[%c0, %c0_0] : memref<8x128xf32, #tpu.memory_space<vmem>>, vector<8x128xf32>
    %1 = vector.extract_strided_slice %0 {offsets = [0, 0], sizes = [8, 64], strides = [1, 1]} : vector<8x128xf32> to vector<8x64xf32>
    %2 = vector.extract_strided_slice %0 {offsets = [0, 64], sizes = [8, 8], strides = [1, 1]} : vector<8x128xf32> to vector<8x8xf32>
    %c0_1 = arith.constant 0 : index
    %c0_2 = arith.constant 0 : index
    %3 = vector.load %arg2[%c0_1, %c0_2] : memref<168x128xf32, #tpu.memory_space<vmem>>, vector<64x32xf32>
    %c64 = arith.constant 64 : index
    %c0_3 = arith.constant 0 : index
    %4 = vector.load %arg2[%c64, %c0_3] : memref<168x128xf32, #tpu.memory_space<vmem>>, vector<32x16xf32>
    %c96 = arith.constant 96 : index
    %c0_4 = arith.constant 0 : index
    %5 = vector.load %arg2[%c96, %c0_4] : memref<168x128xf32, #tpu.memory_space<vmem>>, vector<8x32xf32>
    %c104 = arith.constant 104 : index
    %c0_5 = arith.constant 0 : index
    %6 = vector.load %arg2[%c104, %c0_5] : memref<168x128xf32, #tpu.memory_space<vmem>>, vector<32x64xf32>
    %c136 = arith.constant 136 : index
    %c0_6 = arith.constant 0 : index
    %7 = vector.load %arg2[%c136, %c0_6] : memref<168x128xf32, #tpu.memory_space<vmem>>, vector<1x32xf32>
    %c144 = arith.constant 144 : index
    %c0_7 = arith.constant 0 : index
    %8 = vector.load %arg2[%c144, %c0_7] : memref<168x128xf32, #tpu.memory_space<vmem>>, vector<1x16xf32>
    %c152 = arith.constant 152 : index
    %c0_8 = arith.constant 0 : index
    %9 = vector.load %arg2[%c152, %c0_8] : memref<168x128xf32, #tpu.memory_space<vmem>>, vector<1x32xf32>
    %c160 = arith.constant 160 : index
    %c0_9 = arith.constant 0 : index
    %10 = vector.load %arg2[%c160, %c0_9] : memref<168x128xf32, #tpu.memory_space<vmem>>, vector<1x64xf32>
    %cst = arith.constant dense<0.000000e+00> : vector<8x32xf32>
    %11 = tpu.matmul %1, %3, %cst {dimension_numbers = #tpu.dot_dimension_numbers<[1], [0], [0], [1], [0, 0, 1, 1], [], []>} : vector<8x64xf32>, vector<64x32xf32>, vector<8x32xf32> -> vector<8x32xf32>
    %12 = vector.broadcast %7 : vector<1x32xf32> to vector<8x32xf32>
    %13 = arith.addf %11, %12 : vector<8x32xf32>
    %cst_10 = arith.constant 0.000000e+00 : f32
    %14 = vector.broadcast %cst_10 : f32 to vector<8x32xf32>
    %15 = arith.maximumf %13, %14 : vector<8x32xf32>
    %cst_11 = arith.constant dense<0.000000e+00> : vector<8x16xf32>
    %16 = tpu.matmul %15, %4, %cst_11 {dimension_numbers = #tpu.dot_dimension_numbers<[1], [0], [0], [1], [0, 0, 1, 1], [], []>} : vector<8x32xf32>, vector<32x16xf32>, vector<8x16xf32> -> vector<8x16xf32>
    %17 = vector.broadcast %8 : vector<1x16xf32> to vector<8x16xf32>
    %18 = arith.addf %16, %17 : vector<8x16xf32>
    %19 = vector.extract_strided_slice %18 {offsets = [0, 0], sizes = [8, 8], strides = [1, 1]} : vector<8x16xf32> to vector<8x8xf32>
    %20 = vector.extract_strided_slice %18 {offsets = [0, 8], sizes = [8, 8], strides = [1, 1]} : vector<8x16xf32> to vector<8x8xf32>
    %cst_12 = arith.constant 5.000000e-01 : f32
    %21 = vector.broadcast %cst_12 : f32 to vector<8x8xf32>
    %22 = arith.mulf %21, %20 : vector<8x8xf32>
    %23 = math.exp %22 : vector<8x8xf32>
    %24 = arith.mulf %23, %2 : vector<8x8xf32>
    %25 = arith.addf %19, %24 : vector<8x8xf32>
    %cst_13 = arith.constant dense<0.000000e+00> : vector<8x32xf32>
    %26 = tpu.matmul %25, %5, %cst_13 {dimension_numbers = #tpu.dot_dimension_numbers<[1], [0], [0], [1], [0, 0, 1, 1], [], []>} : vector<8x8xf32>, vector<8x32xf32>, vector<8x32xf32> -> vector<8x32xf32>
    %27 = vector.broadcast %9 : vector<1x32xf32> to vector<8x32xf32>
    %28 = arith.addf %26, %27 : vector<8x32xf32>
    %cst_14 = arith.constant 0.000000e+00 : f32
    %29 = vector.broadcast %cst_14 : f32 to vector<8x32xf32>
    %30 = arith.maximumf %28, %29 : vector<8x32xf32>
    %cst_15 = arith.constant dense<0.000000e+00> : vector<8x64xf32>
    %31 = tpu.matmul %30, %6, %cst_15 {dimension_numbers = #tpu.dot_dimension_numbers<[1], [0], [0], [1], [0, 0, 1, 1], [], []>} : vector<8x32xf32>, vector<32x64xf32>, vector<8x64xf32> -> vector<8x64xf32>
    %32 = vector.broadcast %10 : vector<1x64xf32> to vector<8x64xf32>
    %33 = arith.addf %31, %32 : vector<8x64xf32>
    %cst_16 = arith.constant 0.000000e+00 : f32
    %34 = vector.broadcast %cst_16 : f32 to vector<8x40xf32>
    %35 = tpu.concatenate %19, %23, %25, %33, %34 in 1 : vector<8x8xf32>, vector<8x8xf32>, vector<8x8xf32>, vector<8x64xf32>, vector<8x40xf32> -> vector<8x128xf32>
    %c0_17 = arith.constant 0 : index
    %c0_18 = arith.constant 0 : index
    %36 = vector.load %arg3[%c0_17, %c0_18] : memref<8x128xf32, #tpu.memory_space<vmem>>, vector<8x128xf32>
    tpu.vector_store %arg3[%c0_17, %c0_18], %35 {strides = array<i32>} : memref<8x128xf32, #tpu.memory_space<vmem>>, vector<8x128xf32>,
    return
  }
  func.func @transform_0(%arg0: i32) -> (i32, i32) {
    %c0_i32 = arith.constant 0 : i32
    %c0_i32_0 = arith.constant 0 : i32
    return %arg0, %c0_i32 : i32, i32
  }
  func.func @transform_1(%arg0: i32) -> (i32, i32) {
    %c0_i32 = arith.constant 0 : i32
    %c0_i32_0 = arith.constant 0 : i32
    %c0_i32_1 = arith.constant 0 : i32
    return %c0_i32, %c0_i32_0 : i32, i32
  }
  func.func @transform_2(%arg0: i32) -> (i32, i32) {
    %c0_i32 = arith.constant 0 : i32
    %c0_i32_0 = arith.constant 0 : i32
    return %arg0, %c0_i32 : i32, i32
  }
}

</mosaic_0001>

<llo_original>
// kernel: vae_forward.1
$region0: #{vae_forward.1}
  #allocation0 [shape = 'u32[]', space=smem, size = 0x4, offset = 0x4, fixed_abs, tag = 'smem constant byte address 0x4 - core index']
  #allocation1 [shape = 'u32[72,128]{1,0:T(1,128)}', space=vmem, size = 0x9000, scoped, tag = 'internal scratch']
  %s0 = inlined_call_operand.vmem [shape: f32[8,128], index: 0, kind: input, shape index: {}]
  %s1 = inlined_call_operand.hbm [shape: f32[168,128], index: 1, kind: input, shape index: {}]
  %s2 = inlined_call_operand.vmem [shape: f32[8,128], index: 2, kind: output, shape index: {}]
  %s3 = sld [smem:[#allocation0]]
  $region22: #{vae_forward.1} parent=0
    _
  %s5 = ssub.s32 1, %s3
  %s6 = scalar_select 0, %s5, %s3
  $region1: #{vae_forward.1} parent=0
    #allocation2 [shape = 'u8[86016]{0}', space=vmem, size = 0x15000, scoped, tag = 'input window, operand 1, single buffered']
    #allocation3 [shape = 's32[1]{0}', space=sflag, size = 0x4, scoped, tag = 'scoped memory for vae_forward.1']
    %7 = vsyncpa [#allocation3], 0
    // Predicated region
    $region2: #{vae_forward.1} parent=1 // pred_check
      _
    $region3: #{vae_forward.1} parent=1 // pred_check_branch
      %9 = sbr.rel (0) target = $region5
    $region4: #{vae_forward.1} parent=1 // pred_region
      _
    $region5: #{vae_forward.1} parent=1 // pred_fallthru
      _
    // Predicated region
    $region6: #{vae_forward.1} parent=1 // pred_check
      _
    $region7: #{vae_forward.1} parent=1 // pred_check_branch
      %11 = sbr.rel (0) target = $region9
    $region8: #{vae_forward.1} parent=1 // pred_region
      %13 = vsyncadd [#allocation3], 0
      %s14 = sshll.u32 %s1, 4
      %s15 = int_to_ptr.hbm [resolvable:$true] %s14
      %s16 = sshll.u32 [#allocation2], 4
      %s17 = int_to_ptr.vmem [resolvable:$true] %s16
      %22 = dma.hbm_to_vmem [thread:$0]  %s15, 2688, %s17, [#allocation3], 128, 128, 8
    $region9: #{vae_forward.1} parent=1 // pred_fallthru
      _
    // Predicated region
    $region10: #{vae_forward.1} parent=1 // pred_check
      _
    $region11: #{vae_forward.1} parent=1 // pred_check_branch
      %24 = sbr.rel (0) target = $region13
    $region12: #{vae_forward.1} parent=1 // pred_region
      %26 = dma.done [#allocation3], 2688
    $region13: #{vae_forward.1} parent=1 // pred_fallthru
      _
    %v27 = vld [vmem:[%s0] sm:$0xff]
    %v28 = vld [vmem:[#allocation2] sm:$0xff]
    %v29 = vld [vmem:[#allocation2 + $0x8] sm:$0xff]
    %v30 = vld [vmem:[#allocation2 + $0x10] sm:$0xff]
    %v31 = vld [vmem:[#allocation2 + $0x18] sm:$0xff]
    %v32 = vld [vmem:[#allocation2 + $0x20] sm:$0xff]
    %v33 = vld [vmem:[#allocation2 + $0x28] sm:$0xff]
    %v34 = vld [vmem:[#allocation2 + $0x30] sm:$0xff]
    %v35 = vld [vmem:[#allocation2 + $0x38] sm:$0xff]
    %v36 = vld [vmem:[#allocation2 + $0x40] sm:$0xff]
    %v37 = vld [vmem:[#allocation2 + $0x48] sm:$0xff]
    %v38 = vld [vmem:[#allocation2 + $0x50] sm:$0xff]
    %v39 = vld [vmem:[#allocation2 + $0x58] sm:$0xff]
    %v40 = vld [vmem:[#allocation2 + $0x60] sm:$0xff]
    %v41 = vld [vmem:[#allocation2 + $0x68] sm:$0xff]
    %v42 = vld [vmem:[#allocation2 + $0x70] sm:$0xff]
    %v43 = vld [vmem:[#allocation2 + $0x78] sm:$0xff]
    %v44 = vld [vmem:[#allocation2 + $0x80] sm:$0xff]
    %v45 = vld [vmem:[#allocation2 + $0x88] sm:$0x1]
    %v46 = vld [vmem:[#allocation2 + $0x90] sm:$0x1]
    %v47 = vld [vmem:[#allocation2 + $0x98] sm:$0x1]
    %v48 = vld [vmem:[#allocation2 + $0xa0] sm:$0x1]
    %v49 = vperm.slane %v45, 0
    %vm50 = vcmask 523264
    %v52 = vsel %vm50, %v27, 0
    %54 = vmatpush.msra.mxu0 0.0
    %55 = vmatpush.msra.mxu0 0.0
    %56 = vmatpush.msra.mxu0 0.0
    %57 = vmatpush.msra.mxu0 0.0
    %58 = vmatpush.msra.mxu0 0.0
    %59 = vmatpush.msra.mxu0 0.0
    %60 = vmatpush.msra.mxu0 0.0
    %61 = vmatpush.msra.mxu0 0.0
    %62 = vmatpush.msra.mxu0 %v35
    %63 = vmatpush.msra.mxu0 %v34
    %64 = vmatpush.msra.mxu0 %v33
    %65 = vmatpush.msra.mxu0 %v32
    %66 = vmatpush.msra.mxu0 %v31
    %67 = vmatpush.msra.mxu0 %v30
    %68 = vmatpush.msra.mxu0 %v29
    %69 = vmatpush.msra.mxu0 %v28
    %70 = vmatmul.f32.gmra.mxu0 %v52
    %v71 = vpop.f32.mrf.mxu0
    %v72 = vadd.f32 %v49, %v71
    %73 = vdwg.mxu0
    %v74 = vmax.f32 %v72, 0.0
    %v75 = vperm.slane %v46, 0
    %vm76 = vcmask 261120
    %v78 = vsel %vm76, %v74, 0
    %80 = vmatpush.msra.mxu0 0.0
    %81 = vmatpush.msra.mxu0 0.0
    %82 = vmatpush.msra.mxu0 0.0
    %83 = vmatpush.msra.mxu0 0.0
    %84 = vmatpush.msra.mxu0 0.0
    %85 = vmatpush.msra.mxu0 0.0
    %86 = vmatpush.msra.mxu0 0.0
    %87 = vmatpush.msra.mxu0 0.0
    %88 = vmatpush.msra.mxu0 0.0
    %89 = vmatpush.msra.mxu0 0.0
    %90 = vmatpush.msra.mxu0 0.0
    %91 = vmatpush.msra.mxu0 0.0
    %92 = vmatpush.msra.mxu0 %v39
    %93 = vmatpush.msra.mxu0 %v38
    %94 = vmatpush.msra.mxu0 %v37
    %95 = vmatpush.msra.mxu0 %v36
    %96 = vmatmul.f32.gmra.mxu0 %v78
    %v97 = vpop.f32.mrf.mxu0
    %v98 = vadd.f32 %v75, %v97
    %99 = vdwg.mxu0
    %v100 = vmul.f32 %v98, 0.5
    %v101 = vmul.f32 %v100, 1.442695
    %v102 = vpow.pop %v101
    %103 = vrot.lane.b32.xlu0 %v27, 72
    %v104 = vpop.permute.xlu0 %103
    %v106 = vmul.f32 %v102, %v104
    %108 = vrot.lane.b32.xlu0 %v106, 120
    %v109 = vpop.permute.xlu0 %108
    %v111 = vadd.f32 %v98, %v109
    %v112 = vperm.slane %v47, 0
    %vm113 = vcmask 64512
    %v115 = vsel %vm113, %v111, 0
    %117 = vmatpush.msra.mxu0 0.0
    %118 = vmatpush.msra.mxu0 0.0
    %119 = vmatpush.msra.mxu0 0.0
    %120 = vmatpush.msra.mxu0 0.0
    %121 = vmatpush.msra.mxu0 0.0
    %122 = vmatpush.msra.mxu0 0.0
    %123 = vmatpush.msra.mxu0 0.0
    %124 = vmatpush.msra.mxu0 0.0
    %125 = vmatpush.msra.mxu0 0.0
    %126 = vmatpush.msra.mxu0 0.0
    %127 = vmatpush.msra.mxu0 0.0
    %128 = vmatpush.msra.mxu0 0.0
    %129 = vmatpush.msra.mxu0 0.0
    %130 = vmatpush.msra.mxu0 0.0
    %131 = vmatpush.msra.mxu0 0.0
    %132 = vmatpush.msra.mxu0 %v40
    %133 = vmatmul.f32.gmra.mxu0 %v115
    %v134 = vpop.f32.mrf.mxu0
    %v135 = vadd.f32 %v112, %v134
    %136 = vdwg.mxu0
    %v137 = vmax.f32 %v135, 0.0
    %v138 = vperm.slane %v48, 0
    %v140 = vsel %vm76, %v137, 0
    %142 = vmatpush.msra.mxu0 0.0
    %143 = vmatpush.msra.mxu0 0.0
    %144 = vmatpush.msra.mxu0 0.0
    %145 = vmatpush.msra.mxu0 0.0
    %146 = vmatpush.msra.mxu0 0.0
    %147 = vmatpush.msra.mxu0 0.0
    %148 = vmatpush.msra.mxu0 0.0
    %149 = vmatpush.msra.mxu0 0.0
    %150 = vmatpush.msra.mxu0 0.0
    %151 = vmatpush.msra.mxu0 0.0
    %152 = vmatpush.msra.mxu0 0.0
    %153 = vmatpush.msra.mxu0 0.0
    %154 = vmatpush.msra.mxu0 %v44
    %155 = vmatpush.msra.mxu0 %v43
    %156 = vmatpush.msra.mxu0 %v42
    %157 = vmatpush.msra.mxu0 %v41
    %158 = vmatmul.f32.gmra.mxu0 %v140
    %v159 = vpop.f32.mrf.mxu0
    %v160 = vadd.f32 %v138, %v159
    %161 = vdwg.mxu0
    %162 = vrot.lane.b32.xlu0 %v111, 16
    %v163 = vpop.permute.xlu0 %162
    %166 = vrot.lane.b32.xlu0 %v160, 24
    %v167 = vpop.permute.xlu0 %166
    %v169 = vsel %vm113, %v98, %v102
    %vm170 = vcmask 130048
    %v171 = vsel %vm170, %v169, %v163
    %vm172 = vcmask 195584
    %v173 = vsel %vm172, %v171, %v167
    %vm174 = vcmask 719872
    %v175 = vsel %vm174, %v173, 0.0
    %176 = vst [vmem:[%s2] sm:$0xff] %v175
    // Predicated region
    $region14: #{vae_forward.1} parent=1 // pred_check
      _
    $region15: #{vae_forward.1} parent=1 // pred_check_branch
      %178 = sbr.rel (0) target = $region17
    $region16: #{vae_forward.1} parent=1 // pred_region
      _
    $region17: #{vae_forward.1} parent=1 // pred_fallthru
      _
    // Predicated region
    $region18: #{vae_forward.1} parent=1 // pred_check
      _
    $region19: #{vae_forward.1} parent=1 // pred_check_branch
      %180 = sbr.rel (0) target = $region21
    $region20: #{vae_forward.1} parent=1 // pred_region
      _
    $region21: #{vae_forward.1} parent=1 // pred_fallthru
      _
    %181 = vsyncpa [#allocation3], 1

</llo_original>
